<compile_context>
chip_gen: v7x
topology: tpu7x:2x2x1
jax: 0.10.0
libtpu: 0.0.40
codegen_flags: <defaults>
</compile_context>

<pallas_src>
import functools

import jax
import jax.numpy as jnp
from jax import lax
from jax.experimental import pallas as pl
from jax.experimental.pallas import tpu as pltpu


def _tv_kernel(x_ref, wmask_ref, out_ref, *, H, W, BC, tBC, ragged):
    # x_ref block: (tBC, H*W) -- a chunk of flattened (batch*channel) planes,
    # in the source dtype.  wmask_ref: (1, max(H*W-1, 1)) f32 column mask.
    HW = H * W
    x = x_ref[...]

    if ragged:
        # Last grid block reads past the end of the array; Pallas does not
        # zero-fill, so mask the invalid planes (diffs are intra-plane only,
        # so zeroed planes contribute exactly 0 to both sums).
        base = pl.program_id(0) * tBC
        plane = base + lax.broadcasted_iota(jnp.int32, (tBC, 1), 0)
        x = jnp.where(plane < BC, x, jnp.zeros((), x.dtype))

    h_partial = jnp.zeros((), jnp.float32)
    w_partial = jnp.zeros((), jnp.float32)

    if H > 1:
        # Vertical neighbour diff: x[k + W] - x[k] for k in [0, (H-1)*W).
        # Pure overlapping slices, no mask (out-of-plane pairs never appear).
        dh = x[:, W:].astype(jnp.float32) - x[:, : HW - W].astype(jnp.float32)
        h_partial = jnp.sum(dh * dh)

    if W > 1:
        # Horizontal neighbour diff: x[k + 1] - x[k], with row-wrap pairs
        # zeroed by the precomputed (1, HW-1) mask (broadcast over sublanes).
        dw = x[:, 1:].astype(jnp.float32) - x[:, : HW - 1].astype(jnp.float32)
        dw = dw * wmask_ref[...]
        w_partial = jnp.sum(dw * dw)

    # Lane-dense (8, 128) output block: sublane 0 = h partial, sublane 1 = w.
    sub = lax.broadcasted_iota(jnp.int32, out_ref.shape, 1)
    out_ref[...] = jnp.where(sub == 0, h_partial,
                             jnp.where(sub == 1, w_partial, 0.0))


def _physical_vmem_bytes():
    try:
        info = pltpu.get_tpu_info()
        return int(getattr(info, "vmem_capacity_bytes", 64 << 20))
    except Exception:
        return 64 << 20


def tv_loss(x, tv_loss_weight: float = 1.0, *,
            target_block_bytes: int = 4 * 1024 * 1024):
    """Pallas TPU implementation of TVLoss.forward (returns scalar float32)."""
    B, C, H, W = x.shape
    HW = H * W
    BC = B * C
    count_h = float(C * (H - 1) * W)
    count_w = float(C * H * (W - 1))

    xf = x.reshape(BC, HW)  # contiguous row-major reshape: layout plumbing only
    itemsize = xf.dtype.itemsize
    plane_bytes = max(HW * itemsize, 1)

    # Planes per block: VMEM-budgeted. Either all planes in one block, or a
    # multiple of 8 planes (sublane tiling) with an in-kernel ragged mask.
    max_planes = max(target_block_bytes // plane_bytes, 1)
    tBC_cand = max(8, (max_planes // 8) * 8)
    tBC = BC if BC <= tBC_cand else tBC_cand
    num_tiles = -(-BC // tBC)
    ragged = (num_tiles * tBC) != BC

    # Precomputed horizontal-validity mask: 1.0 where the flattened diff
    # x[k+1]-x[k] stays within a row (column != W-1), else 0.0.
    mlen = max(HW - 1, 1)
    if W > 1:
        cols = jnp.arange(mlen, dtype=jnp.int32) % jnp.int32(W)
        wmask = (cols != (W - 1)).astype(jnp.float32).reshape(1, mlen)
    else:
        wmask = jnp.zeros((1, mlen), jnp.float32)

    # Scoped-VMEM budget: double-buffered input block + f32 diff temporaries
    # + small mask/output buffers, with headroom under the physical capacity.
    block_in_bytes = tBC * HW * itemsize
    block_f32_bytes = tBC * HW * 4
    phys = _physical_vmem_bytes()
    cap = max(phys - (8 << 20), 32 << 20)
    needed = 2 * block_in_bytes + 5 * block_f32_bytes + (4 << 20)
    vmem_limit = int(min(max(needed, 32 << 20), cap))

    kernel = functools.partial(_tv_kernel, H=H, W=W, BC=BC, tBC=tBC,
                               ragged=ragged)

    parts = pl.pallas_call(
        kernel,
        out_shape=jax.ShapeDtypeStruct((num_tiles, 8, 128), jnp.float32),
        grid_spec=pltpu.PrefetchScalarGridSpec(
            num_scalar_prefetch=0,
            grid=(num_tiles,),
            in_specs=[
                pl.BlockSpec((tBC, HW), lambda i: (i, 0)),
                pl.BlockSpec((1, mlen), lambda i: (0, 0)),
            ],
            out_specs=pl.BlockSpec((1, 8, 128), lambda i: (i, 0, 0)),
        ),
        compiler_params=pltpu.CompilerParams(
            dimension_semantics=("parallel",),
            vmem_limit_bytes=vmem_limit,
        ),
    )(xf, wmask)

    h_tv = jnp.sum(parts[:, 0, 0])
    w_tv = jnp.sum(parts[:, 1, 0])
    loss = tv_loss_weight * 2.0 * (h_tv / count_h + w_tv / count_w) / B
    return loss.astype(jnp.float32)


def _tv_loss_ref(x, tv_loss_weight: float = 1.0):
    """Pure-JAX reference mirroring the PyTorch forward."""
    x = x.astype(jnp.float32)
    B, C, H, W = x.shape
    count_h = C * (H - 1) * W
    count_w = C * H * (W - 1)
    h_tv = jnp.sum((x[:, :, 1:, :] - x[:, :, : H - 1, :]) ** 2)
    w_tv = jnp.sum((x[:, :, :, 1:] - x[:, :, :, : W - 1]) ** 2)
    return tv_loss_weight * 2.0 * (h_tv / count_h + w_tv / count_w) / B


if __name__ == "__main__":
    key = jax.random.PRNGKey(0)
    x = jax.random.normal(key, (2, 4, 16, 16), dtype=jnp.float32)

    out = tv_loss(x, tv_loss_weight=1.0)
    out = jax.block_until_ready(out)

    ref = _tv_loss_ref(x, tv_loss_weight=1.0)
    assert jnp.allclose(out, ref, rtol=1e-5, atol=1e-5), (out, ref)

    print("KERNEL_OK")
</pallas_src>

<mosaic_0001>
module attributes {stable_mosaic.version = 11 : i64} {
  func.func @_tv_kernel(%arg0: i32, %arg1: memref<8x256xf32, #tpu.memory_space<vmem>>, %arg2: memref<1x255xf32, #tpu.memory_space<vmem>>, %arg3: memref<1x8x128xf32, #tpu.memory_space<vmem>>) attributes {dimension_semantics = [#tpu.dimension_semantics<parallel>], iteration_bounds = array<i64: 1>, scalar_prefetch = 0 : i64, scratch_operands = 0 : i64, tpu.core_type = #tpu.core_type<tc>, window_params = [{transform_indices = @transform_0, window_bounds = array<i64: 8, 256>}, {pipeline_mode = #tpu.pipeline_mode<synchronous>, transform_indices = @transform_1, window_bounds = array<i64: 1, 255>}, {transform_indices = @transform_2, window_bounds = array<i64: 1, 8, 128>}]} {
    %c0 = arith.constant 0 : index
    %c0_0 = arith.constant 0 : index
    %0 = vector.load %arg1[%c0, %c0_0] : memref<8x256xf32, #tpu.memory_space<vmem>>, vector<8x256xf32>
    %1 = vector.extract_strided_slice %0 {offsets = [0, 16], sizes = [8, 240], strides = [1, 1]} : vector<8x256xf32> to vector<8x240xf32>
    %2 = vector.extract_strided_slice %0 {offsets = [0, 0], sizes = [8, 240], strides = [1, 1]} : vector<8x256xf32> to vector<8x240xf32>
    %3 = arith.subf %1, %2 : vector<8x240xf32>
    %4 = arith.mulf %3, %3 : vector<8x240xf32>
    %5 = vector.shape_cast %4 : vector<8x240xf32> to vector<1x8x240xf32>
    %cst = arith.constant dense<0.000000e+00> : vector<1xf32>
    %6 = vector.multi_reduction <add>, %5, %cst [1, 2] : vector<1x8x240xf32> to vector<1xf32>
    %7 = vector.shape_cast %6 : vector<1xf32> to vector<1x1x1xf32>
    %8 = vector.extract %7[0, 0, 0] : f32 from vector<1x1x1xf32>
    %9 = vector.extract_strided_slice %0 {offsets = [0, 1], sizes = [8, 255], strides = [1, 1]} : vector<8x256xf32> to vector<8x255xf32>
    %10 = vector.extract_strided_slice %0 {offsets = [0, 0], sizes = [8, 255], strides = [1, 1]} : vector<8x256xf32> to vector<8x255xf32>
    %11 = arith.subf %9, %10 : vector<8x255xf32>
    %c0_1 = arith.constant 0 : index
    %c0_2 = arith.constant 0 : index
    %12 = vector.load %arg2[%c0_1, %c0_2] : memref<1x255xf32, #tpu.memory_space<vmem>>, vector<1x255xf32>
    %13 = vector.broadcast %12 : vector<1x255xf32> to vector<8x255xf32>
    %14 = arith.mulf %11, %13 : vector<8x255xf32>
    %15 = arith.mulf %14, %14 : vector<8x255xf32>
    %16 = vector.shape_cast %15 : vector<8x255xf32> to vector<1x8x255xf32>
    %cst_3 = arith.constant dense<0.000000e+00> : vector<1xf32>
    %17 = vector.multi_reduction <add>, %16, %cst_3 [1, 2] : vector<1x8x255xf32> to vector<1xf32>
    %18 = vector.shape_cast %17 : vector<1xf32> to vector<1x1x1xf32>
    %19 = vector.extract %18[0, 0, 0] : f32 from vector<1x1x1xf32>
    %20 = tpu.iota {dimensions = array<i32: 1>} : vector<1x8x128xi32>
    %c0_i32 = arith.constant 0 : i32
    %21 = vector.broadcast %c0_i32 : i32 to vector<1x8x128xi32>
    %22 = arith.cmpi eq, %20, %21 : vector<1x8x128xi32>
    %c1_i32 = arith.constant 1 : i32
    %23 = vector.broadcast %c1_i32 : i32 to vector<1x8x128xi32>
    %24 = arith.cmpi eq, %20, %23 : vector<1x8x128xi32>
    %cst_4 = arith.constant 0.000000e+00 : f32
    %25 = vector.broadcast %19 : f32 to vector<1x8x128xf32>
    %26 = vector.broadcast %cst_4 : f32 to vector<1x8x128xf32>
    %27 = arith.select %24, %25, %26 : vector<1x8x128xi1>, vector<1x8x128xf32>
    %28 = vector.broadcast %8 : f32 to vector<1x8x128xf32>
    %29 = arith.select %22, %28, %27 : vector<1x8x128xi1>, vector<1x8x128xf32>
    %c0_5 = arith.constant 0 : index
    %c0_6 = arith.constant 0 : index
    %c0_7 = arith.constant 0 : index
    %30 = vector.load %arg3[%c0_5, %c0_6, %c0_7] : memref<1x8x128xf32, #tpu.memory_space<vmem>>, vector<1x8x128xf32>
    tpu.vector_store %arg3[%c0_5, %c0_6, %c0_7], %29 {strides = array<i32>} : memref<1x8x128xf32, #tpu.memory_space<vmem>>, vector<1x8x128xf32>,
    return
  }
  func.func @transform_0(%arg0: i32) -> (i32, i32) {
    %c0_i32 = arith.constant 0 : i32
    %c0_i32_0 = arith.constant 0 : i32
    return %arg0, %c0_i32 : i32, i32
  }
  func.func @transform_1(%arg0: i32) -> (i32, i32) {
    %c0_i32 = arith.constant 0 : i32
    %c0_i32_0 = arith.constant 0 : i32
    %c0_i32_1 = arith.constant 0 : i32
    return %c0_i32, %c0_i32_0 : i32, i32
  }
  func.func @transform_2(%arg0: i32) -> (i32, i32, i32) {
    %c0_i32 = arith.constant 0 : i32
    %c0_i32_0 = arith.constant 0 : i32
    %c0_i32_1 = arith.constant 0 : i32
    return %arg0, %c0_i32, %c0_i32_0 : i32, i32, i32
  }
}

</mosaic_0001>

<llo_original>
// kernel: tpu_custom_call.1
$region0: #{tpu_custom_call.1}
  #allocation0 [shape = 'u32[]', space=smem, size = 0x4, offset = 0x4, fixed_abs, tag = 'smem constant byte address 0x4 - core index']
  #allocation1 [shape = 'u32[144,128]{1,0:T(1,128)}', space=vmem, size = 0x12000, scoped, tag = 'internal scratch']
  %s0 = inlined_call_operand.hbm [shape: f32[8,256], index: 0, kind: input, shape index: {}]
  %s1 = inlined_call_operand.vmem [shape: f32[1,255], index: 1, kind: input, shape index: {}]
  %s2 = inlined_call_operand.hbm [shape: f32[1,8,128], index: 2, kind: output, shape index: {}]
  %s3 = sld [smem:[#allocation0]]
  $region22: #{tpu_custom_call.1} parent=0
    _
  %s5 = ssub.s32 1, %s3
  %s6 = scalar_select 0, %s5, %s3
  $region1: #{tpu_custom_call.1} parent=0
    #allocation2 [shape = 'u8[8192]{0}', space=vmem, size = 0x2000, scoped, tag = 'input window, operand 0, single buffered']
    #allocation3 [shape = 's32[1]{0}', space=sflag, size = 0x4, scoped, tag = 'scoped memory for tpu_custom_call.1']
    #allocation4 [shape = 's32[1]{0}', space=sflag, size = 0x4, scoped, tag = 'scoped memory for tpu_custom_call.1']
    #allocation5 [shape = 'u8[4096]{0}', space=vmem, size = 0x1000, scoped, tag = 'output window, operand 0, single buffered']
    %7 = vsyncpa [#allocation3], 0
    %8 = vsyncpa [#allocation4], 0
    // Predicated region
    $region2: #{tpu_custom_call.1} parent=1 // pred_check
      _
    $region3: #{tpu_custom_call.1} parent=1 // pred_check_branch
      %10 = sbr.rel (0) target = $region5
    $region4: #{tpu_custom_call.1} parent=1 // pred_region
      %s12 = ssub.s32 256, 256
      %13 = vsyncadd [#allocation3], %s12
      %s15 = sshll.u32 [#allocation2], 4
      %s16 = int_to_ptr.vmem [resolvable:$true] %s15
      %18 = dma.hbm_to_vmem [thread:$0]  %s0, 256, %s16, [#allocation3]
    $region5: #{tpu_custom_call.1} parent=1 // pred_fallthru
      _
    // Predicated region
    $region6: #{tpu_custom_call.1} parent=1 // pred_check
      _
    $region7: #{tpu_custom_call.1} parent=1 // pred_check_branch
      %20 = sbr.rel (0) target = $region9
    $region8: #{tpu_custom_call.1} parent=1 // pred_region
      _
    $region9: #{tpu_custom_call.1} parent=1 // pred_fallthru
      _
    // Predicated region
    $region10: #{tpu_custom_call.1} parent=1 // pred_check
      _
    $region11: #{tpu_custom_call.1} parent=1 // pred_check_branch
      %22 = sbr.rel (0) target = $region13
    $region12: #{tpu_custom_call.1} parent=1 // pred_region
      %23 = dma.done [#allocation3], 256
    $region13: #{tpu_custom_call.1} parent=1 // pred_fallthru
      _
    %v24 = vld [vmem:[#allocation2] sm:$0xff]
    %v25 = vld [vmem:[#allocation2 + $0x8] sm:$0xff]
    %28 = vrot.lane.b32.xlu0 %v24, 16
    %v29 = vpop.permute.xlu0 %28
    %30 = vrot.lane.b32.xlu0 %v25, 16
    %v31 = vpop.permute.xlu0 %30
    %vm32 = vcmask 130048
    %v33 = vsel %vm32, %v29, %v31
    %v36 = vsub.f32 %v24, %v29
    %v37 = vsub.f32 %v25, %v33
    %v38 = vmul.f32 %v36, %v36
    %v39 = vmul.f32 %v37, %v37
    %42 = vrot.lane.b32.xlu0 %v38, 112
    %v43 = vpop.permute.xlu0 %42
    %44 = vrot.lane.b32.xlu0 %v39, 112
    %v45 = vpop.permute.xlu0 %44
    %vm46 = vcmask 916480
    %v47 = vsel %vm46, %v43, %v45
    %v50 = vsel %vm46, %v45, 0.0
    %v51 = vadd.f32 %v47, %v50
    %52 = vadd.xlane.f32.xlu0 %v51
    %v53 = vpop.xlane.xlu0 %52
    %v54 = vrot.slane %v53, 4
    %v55 = vadd.f32 %v53, %v54
    %v56 = vrot.slane %v55, 2
    %v57 = vadd.f32 %v55, %v56
    %v58 = vrot.slane %v57, 1
    %v59 = vadd.f32 %v57, %v58
    %s60 = vtos %v59
    %61 = vrot.lane.b32.xlu0 %v24, 1
    %v62 = vpop.permute.xlu0 %61
    %63 = vrot.lane.b32.xlu0 %v25, 1
    %v64 = vpop.permute.xlu0 %63
    %vm65 = vcmask 7168
    %v66 = vsel %vm65, %v62, %v64
    %v69 = vsub.f32 %v24, %v62
    %v70 = vsub.f32 %v25, %v66
    %v71 = vld [vmem:[%s1] sm:$0x3]
    %v73 = vlaneseq
    %v74 = vshrl.u32 %v73, 7
    %v75 = vsub.s32 0, %v74
    %v76 = vrot.slane %v71, %v75
    %v77 = vlaneseq
    %v78 = vshrl.u32 %v77, 7
    %v79 = vsub.s32 1, %v78
    %v80 = vrot.slane %v71, %v79
    %81 = vrot.lane.b32.xlu0 %v76, 1
    %v82 = vpop.permute.xlu0 %81
    %83 = vrot.lane.b32.xlu0 %v80, 1
    %v84 = vpop.permute.xlu0 %83
    %v85 = vsel %vm65, %v82, %v84
    %v88 = vmul.f32 %v69, %v82
    %v89 = vmul.f32 %v70, %v85
    %v90 = vmul.f32 %v88, %v88
    %v91 = vmul.f32 %v89, %v89
    %94 = vrot.lane.b32.xlu0 %v90, 127
    %v95 = vpop.permute.xlu0 %94
    %96 = vrot.lane.b32.xlu0 %v91, 127
    %v97 = vpop.permute.xlu0 %96
    %vm98 = vcmask 1039360
    %v99 = vsel %vm98, %v95, %v97
    %v102 = vsel %vm98, %v97, 0.0
    %v103 = vadd.f32 %v99, %v102
    %104 = vadd.xlane.f32.xlu0 %v103
    %v105 = vpop.xlane.xlu0 %104
    %v106 = vrot.slane %v105, 4
    %v107 = vadd.f32 %v105, %v106
    %v108 = vrot.slane %v107, 2
    %v109 = vadd.f32 %v107, %v108
    %v110 = vrot.slane %v109, 1
    %v111 = vadd.f32 %v109, %v110
    %s112 = vtos %v111
    %v113 = vlaneseq
    %v114 = vshrl.u32 %v113, 7
    %vm115 = vcmp.eq.s32.totalorder %v114, 0
    %vm116 = vcmp.eq.s32.totalorder %v114, 1
    %v117 = vstv %s112
    %v118 = vsel %vm116, %v117, 0.0
    %v119 = vstv %s60
    %v120 = vsel %vm115, %v119, %v118
    %121 = vst [vmem:[#allocation5] sm:$0xff] %v120
    // Predicated region
    $region14: #{tpu_custom_call.1} parent=1 // pred_check
      _
    $region15: #{tpu_custom_call.1} parent=1 // pred_check_branch
      %123 = sbr.rel (0) target = $region17
    $region16: #{tpu_custom_call.1} parent=1 // pred_region
      %s125 = ssub.s32 128, 128
      %126 = vsyncadd [#allocation4], %s125
      %s128 = sshll.u32 [#allocation5], 4
      %s129 = int_to_ptr.vmem [resolvable:$true] %s128
      %131 = dma.vmem_to_hbm [thread:$0]  %s129, 128, %s2, [#allocation4]
    $region17: #{tpu_custom_call.1} parent=1 // pred_fallthru
      _
    // Predicated region
    $region18: #{tpu_custom_call.1} parent=1 // pred_check
      _
    $region19: #{tpu_custom_call.1} parent=1 // pred_check_branch
      %133 = sbr.rel (0) target = $region21
    $region20: #{tpu_custom_call.1} parent=1 // pred_region
      %134 = dma.done [#allocation4], 128
    $region21: #{tpu_custom_call.1} parent=1 // pred_fallthru
      _
    %135 = vsyncpa [#allocation3], 1
    %136 = vsyncpa [#allocation4], 1

</llo_original>
